<compile_context>
chip_gen: v6e
topology: v6e:2x2x1
jax: 0.10.0
libtpu: 0.0.40
codegen_flags: <defaults>
</compile_context>

<pallas_src>
import functools

import jax
import jax.numpy as jnp
from jax.experimental import pallas as pl
from jax.experimental.pallas import tpu as pltpu


def _vmem_capacity_bytes():
    """Per-core VMEM capacity; conservative 64 MiB fallback (v7x)."""
    try:
        info = pltpu.get_tpu_info()
        cap = getattr(info, "vmem_capacity_bytes", None)
        if cap:
            return int(cap)
    except Exception:
        pass
    return 64 << 20


def _tile_vmem_bytes(tm, input_dim, hidden_dim, output_dim, weight_bufs):
    """Rough f32 VMEM footprint of one pipelined batch tile."""
    return 4 * (
        2 * tm * input_dim                                   # double-buffered X tile
        + weight_bufs * (input_dim * hidden_dim              # resident WIH
                         + hidden_dim * output_dim)          # resident WHO
        + 2 * tm * hidden_dim                                # intermediate Y2 headroom
        + 2 * tm * output_dim                                # double-buffered out tile
    )


def _pick_tm(B, input_dim, hidden_dim, output_dim, usable_vmem):
    """Largest batch tile that fits VMEM; prefer a tile dividing B."""
    def fits(tm):
        return 2 * _tile_vmem_bytes(tm, input_dim, hidden_dim, output_dim, 2) <= usable_vmem

    # Small batch: one block, no grid-loop overhead.
    if B <= 2048 and fits(B):
        return B
    candidates = [t for t in (2048, 1024, 512, 256, 128, 64, 32, 16, 8) if t <= B]
    fitting = [t for t in candidates if fits(t)] or [8]
    for t in fitting:                 # biggest tile that evenly divides B
        if B % t == 0:
            return t
    return fitting[0]                 # else biggest that fits (masked remainder step)


def _sigmoid(z):
    # logistic via one EUP tanh push: sigmoid(z) = 0.5 * (tanh(z/2) + 1)
    return 0.5 * (jnp.tanh(0.5 * z) + 1.0)


def _mlp_fwd_kernel(x_ref, wih_ref, who_ref, o_ref, *, alpha):
    # Whole hot path (two matmuls + two sigmoids) fused in one kernel body.
    x = x_ref[...]                      # (tm, input_dim)
    y1 = jnp.dot(x, wih_ref[...], preferred_element_type=jnp.float32)
    y2 = _sigmoid(alpha * y1)
    y3 = jnp.dot(y2, who_ref[...], preferred_element_type=jnp.float32)
    y4 = _sigmoid(alpha * y3)
    o_ref[...] = y4.astype(o_ref.dtype)


def mlp_forward(x, wih, who, alpha, *, tm=None):
    """Pallas wrapper: tiles the batch dim; weights stay resident per tile."""
    B, input_dim = x.shape
    assert wih.shape[0] == input_dim
    hidden_dim = wih.shape[1]
    assert who.shape[0] == hidden_dim
    output_dim = who.shape[1]

    vmem_cap = _vmem_capacity_bytes()
    usable_vmem = (vmem_cap * 3) // 4   # leave compiler/internal headroom

    if tm is None:
        tm = _pick_tm(B, input_dim, hidden_dim, output_dim, usable_vmem)

    grid = (pl.cdiv(B, tm),)
    kernel = functools.partial(_mlp_fwd_kernel, alpha=float(alpha))
    out_shape = jax.ShapeDtypeStruct((B, output_dim), jnp.float32)

    def run(single_buffer_weights):
        weight_kwargs = {}
        weight_bufs = 2
        if single_buffer_weights:
            # Block-invariant index_map -> no need for a second weight buffer.
            weight_kwargs = dict(pipeline_mode=pl.Buffered(1))
            weight_bufs = 1

        vmem_bytes = _tile_vmem_bytes(tm, input_dim, hidden_dim, output_dim, weight_bufs)
        vmem_limit = int(min(max(2 * vmem_bytes, 16 << 20), usable_vmem))

        call = pl.pallas_call(
            kernel,
            out_shape=out_shape,
            grid_spec=pltpu.PrefetchScalarGridSpec(
                num_scalar_prefetch=0,
                grid=grid,
                in_specs=[
                    # X: one batch tile per grid step.
                    pl.BlockSpec((tm, input_dim), lambda i: (i, 0)),
                    # Weights: full arrays, same block every step (resident).
                    pl.BlockSpec((input_dim, hidden_dim), lambda i: (0, 0),
                                 **weight_kwargs),
                    pl.BlockSpec((hidden_dim, output_dim), lambda i: (0, 0),
                                 **weight_kwargs),
                ],
                # Unpadded output: last dim == full array dim, so the block is
                # legal; masked narrow stores beat 16x padded HBM writeback.
                out_specs=pl.BlockSpec((tm, output_dim), lambda i: (i, 0)),
            ),
            compiler_params=pltpu.CompilerParams(
                dimension_semantics=("parallel",),
                vmem_limit_bytes=vmem_limit,
            ),
        )
        return jax.block_until_ready(call(x, wih, who))

    try:
        return run(single_buffer_weights=True)
    except Exception:
        # Some Pallas versions reject pipeline_mode=Buffered(1); fall back to
        # the default (double-buffered weights) known-good configuration.
        return run(single_buffer_weights=False)


def mlp_forward_ref(x, wih, who, alpha):
    """Pure-JAX reference (mirrors the PyTorch forward exactly)."""
    y1 = x @ wih
    y2 = 1.0 / (1.0 + jnp.exp(-alpha * y1))
    y3 = y2 @ who
    return 1.0 / (1.0 + jnp.exp(-alpha * y3))


if __name__ == "__main__":
    # Deterministic "module init": WIH ~ randn(input_dim, hidden_dim),
    # WHO ~ randn(hidden_dim, output_dim).
    input_dim, hidden_dim, output_dim = 16, 32, 8
    alpha = 0.5

    key = jax.random.PRNGKey(0)
    kwih, kwho, kx, kx2 = jax.random.split(key, 4)
    wih = jax.random.normal(kwih, (input_dim, hidden_dim), dtype=jnp.float32)
    who = jax.random.normal(kwho, (hidden_dim, output_dim), dtype=jnp.float32)

    # Small-batch path (single block, grid=(1,)).
    batch = 8
    x = jax.random.normal(kx, (batch, input_dim), dtype=jnp.float32)
    y4 = mlp_forward(x, wih, who, alpha)
    y4_ref = mlp_forward_ref(x, wih, who, alpha)
    assert y4.shape == (batch, output_dim)
    assert jnp.allclose(y4, y4_ref, atol=1e-5, rtol=1e-5), \
        "mismatch vs reference (small batch)"

    # Tiled path: B=4096 -> tm=2048, grid=(2,), exercises the batch pipeline.
    batch2 = 4096
    x2 = jax.random.normal(kx2, (batch2, input_dim), dtype=jnp.float32)
    y4b = mlp_forward(x2, wih, who, alpha)
    y4b_ref = mlp_forward_ref(x2, wih, who, alpha)
    assert y4b.shape == (batch2, output_dim)
    assert jnp.allclose(y4b, y4b_ref, atol=1e-5, rtol=1e-5), \
        "mismatch vs reference (tiled batch)"

    print("KERNEL_OK")
</pallas_src>

<mosaic_0001>
module attributes {stable_mosaic.version = 11 : i64} {
  func.func @_mlp_fwd_kernel(%arg0: i32, %arg1: memref<8x16xf32, #tpu.memory_space<vmem>>, %arg2: memref<16x32xf32, #tpu.memory_space<vmem>>, %arg3: memref<32x8xf32, #tpu.memory_space<vmem>>, %arg4: memref<8x8xf32, #tpu.memory_space<vmem>>) attributes {dimension_semantics = [#tpu.dimension_semantics<parallel>], iteration_bounds = array<i64: 1>, scalar_prefetch = 0 : i64, scratch_operands = 0 : i64, tpu.core_type = #tpu.core_type<tc>, window_params = [{transform_indices = @transform_0, window_bounds = array<i64: 8, 16>}, {pipeline_mode = #tpu.pipeline_mode<synchronous>, transform_indices = @transform_1, window_bounds = array<i64: 16, 32>}, {pipeline_mode = #tpu.pipeline_mode<synchronous>, transform_indices = @transform_2, window_bounds = array<i64: 32, 8>}, {transform_indices = @transform_3, window_bounds = array<i64: 8, 8>}]} {
    %c0 = arith.constant 0 : index
    %c0_0 = arith.constant 0 : index
    %0 = vector.load %arg1[%c0, %c0_0] : memref<8x16xf32, #tpu.memory_space<vmem>>, vector<8x16xf32>
    %c0_1 = arith.constant 0 : index
    %c0_2 = arith.constant 0 : index
    %1 = vector.load %arg2[%c0_1, %c0_2] : memref<16x32xf32, #tpu.memory_space<vmem>>, vector<16x32xf32>
    %cst = arith.constant dense<0.000000e+00> : vector<8x32xf32>
    %2 = tpu.matmul %0, %1, %cst {dimension_numbers = #tpu.dot_dimension_numbers<[1], [0], [0], [1], [0, 0, 1, 1], [], []>} : vector<8x16xf32>, vector<16x32xf32>, vector<8x32xf32> -> vector<8x32xf32>
    %cst_3 = arith.constant 5.000000e-01 : f32
    %3 = vector.broadcast %cst_3 : f32 to vector<8x32xf32>
    %4 = arith.mulf %3, %2 : vector<8x32xf32>
    %cst_4 = arith.constant 5.000000e-01 : f32
    %5 = vector.broadcast %cst_4 : f32 to vector<8x32xf32>
    %6 = arith.mulf %5, %4 : vector<8x32xf32>
    %7 = math.tanh %6 : vector<8x32xf32>
    %cst_5 = arith.constant 1.000000e+00 : f32
    %8 = vector.broadcast %cst_5 : f32 to vector<8x32xf32>
    %9 = arith.addf %7, %8 : vector<8x32xf32>
    %cst_6 = arith.constant 5.000000e-01 : f32
    %10 = vector.broadcast %cst_6 : f32 to vector<8x32xf32>
    %11 = arith.mulf %10, %9 : vector<8x32xf32>
    %c0_7 = arith.constant 0 : index
    %c0_8 = arith.constant 0 : index
    %12 = vector.load %arg3[%c0_7, %c0_8] : memref<32x8xf32, #tpu.memory_space<vmem>>, vector<32x8xf32>
    %cst_9 = arith.constant dense<0.000000e+00> : vector<8x8xf32>
    %13 = tpu.matmul %11, %12, %cst_9 {dimension_numbers = #tpu.dot_dimension_numbers<[1], [0], [0], [1], [0, 0, 1, 1], [], []>} : vector<8x32xf32>, vector<32x8xf32>, vector<8x8xf32> -> vector<8x8xf32>
    %cst_10 = arith.constant 5.000000e-01 : f32
    %14 = vector.broadcast %cst_10 : f32 to vector<8x8xf32>
    %15 = arith.mulf %14, %13 : vector<8x8xf32>
    %cst_11 = arith.constant 5.000000e-01 : f32
    %16 = vector.broadcast %cst_11 : f32 to vector<8x8xf32>
    %17 = arith.mulf %16, %15 : vector<8x8xf32>
    %18 = math.tanh %17 : vector<8x8xf32>
    %cst_12 = arith.constant 1.000000e+00 : f32
    %19 = vector.broadcast %cst_12 : f32 to vector<8x8xf32>
    %20 = arith.addf %18, %19 : vector<8x8xf32>
    %cst_13 = arith.constant 5.000000e-01 : f32
    %21 = vector.broadcast %cst_13 : f32 to vector<8x8xf32>
    %22 = arith.mulf %21, %20 : vector<8x8xf32>
    %c0_14 = arith.constant 0 : index
    %c0_15 = arith.constant 0 : index
    %23 = vector.load %arg4[%c0_14, %c0_15] : memref<8x8xf32, #tpu.memory_space<vmem>>, vector<8x8xf32>
    tpu.vector_store %arg4[%c0_14, %c0_15], %22 {strides = array<i32>} : memref<8x8xf32, #tpu.memory_space<vmem>>, vector<8x8xf32>,
    return
  }
  func.func @transform_0(%arg0: i32) -> (i32, i32) {
    %c0_i32 = arith.constant 0 : i32
    %c0_i32_0 = arith.constant 0 : i32
    return %arg0, %c0_i32 : i32, i32
  }
  func.func @transform_1(%arg0: i32) -> (i32, i32) {
    %c0_i32 = arith.constant 0 : i32
    %c0_i32_0 = arith.constant 0 : i32
    %c0_i32_1 = arith.constant 0 : i32
    return %c0_i32, %c0_i32_0 : i32, i32
  }
  func.func @transform_2(%arg0: i32) -> (i32, i32) {
    %c0_i32 = arith.constant 0 : i32
    %c0_i32_0 = arith.constant 0 : i32
    %c0_i32_1 = arith.constant 0 : i32
    return %c0_i32, %c0_i32_0 : i32, i32
  }
  func.func @transform_3(%arg0: i32) -> (i32, i32) {
    %c0_i32 = arith.constant 0 : i32
    %c0_i32_0 = arith.constant 0 : i32
    return %arg0, %c0_i32 : i32, i32
  }
}

module attributes {stable_mosaic.version = 11 : i64} {
  func.func @_mlp_fwd_kernel(%arg0: i32, %arg1: memref<8x16xf32, #tpu.memory_space<vmem>>, %arg2: memref<16x32xf32, #tpu.memory_space<vmem>>, %arg3: memref<32x8xf32, #tpu.memory_space<vmem>>, %arg4: memref<8x8xf32, #tpu.memory_space<vmem>>) attributes {dimension_semantics = [#tpu.dimension_semantics<parallel>], iteration_bounds = array<i64: 1>, scalar_prefetch = 0 : i64, scratch_operands = 0 : i64, tpu.core_type = #tpu.core_type<tc>, window_params = [{transform_indices = @transform_0, window_bounds = array<i64: 8, 16>}, {pipeline_mode = #tpu.pipeline_mode<synchronous>, transform_indices = @transform_1, window_bounds = array<i64: 16, 32>}, {pipeline_mode = #tpu.pipeline_mode<synchronous>, transform_indices = @transform_2, window_bounds = array<i64: 32, 8>}, {transform_indices = @transform_3, window_bounds = array<i64: 8, 8>}]} {
    %c0 = arith.constant 0 : index
    %c0_0 = arith.constant 0 : index
    %0 = vector.load %arg1[%c0, %c0_0] : memref<8x16xf32, #tpu.memory_space<vmem>>, vector<8x16xf32>
    %c0_1 = arith.constant 0 : index
    %c0_2 = arith.constant 0 : index
    %1 = vector.load %arg2[%c0_1, %c0_2] : memref<16x32xf32, #tpu.memory_space<vmem>>, vector<16x32xf32>
    %cst = arith.constant dense<0.000000e+00> : vector<8x32xf32>
    %2 = tpu.matmul %0, %1, %cst {dimension_numbers = #tpu.dot_dimension_numbers<[1], [0], [0], [1], [0, 0, 1, 1], [], []>} : vector<8x16xf32>, vector<16x32xf32>, vector<8x32xf32> -> vector<8x32xf32>
    %cst_3 = arith.constant 5.000000e-01 : f32
    %3 = vector.broadcast %cst_3 : f32 to vector<8x32xf32>
    %4 = arith.mulf %3, %2 : vector<8x32xf32>
    %cst_4 = arith.constant 5.000000e-01 : f32
    %5 = vector.broadcast %cst_4 : f32 to vector<8x32xf32>
    %6 = arith.mulf %5, %4 : vector<8x32xf32>
    %7 = math.tanh %6 : vector<8x32xf32>
    %cst_5 = arith.constant 1.000000e+00 : f32
    %8 = vector.broadcast %cst_5 : f32 to vector<8x32xf32>
    %9 = arith.addf %7, %8 : vector<8x32xf32>
    %cst_6 = arith.constant 5.000000e-01 : f32
    %10 = vector.broadcast %cst_6 : f32 to vector<8x32xf32>
    %11 = arith.mulf %10, %9 : vector<8x32xf32>
    %c0_7 = arith.constant 0 : index
    %c0_8 = arith.constant 0 : index
    %12 = vector.load %arg3[%c0_7, %c0_8] : memref<32x8xf32, #tpu.memory_space<vmem>>, vector<32x8xf32>
    %cst_9 = arith.constant dense<0.000000e+00> : vector<8x8xf32>
    %13 = tpu.matmul %11, %12, %cst_9 {dimension_numbers = #tpu.dot_dimension_numbers<[1], [0], [0], [1], [0, 0, 1, 1], [], []>} : vector<8x32xf32>, vector<32x8xf32>, vector<8x8xf32> -> vector<8x8xf32>
    %cst_10 = arith.constant 5.000000e-01 : f32
    %14 = vector.broadcast %cst_10 : f32 to vector<8x8xf32>
    %15 = arith.mulf %14, %13 : vector<8x8xf32>
    %cst_11 = arith.constant 5.000000e-01 : f32
    %16 = vector.broadcast %cst_11 : f32 to vector<8x8xf32>
    %17 = arith.mulf %16, %15 : vector<8x8xf32>
    %18 = math.tanh %17 : vector<8x8xf32>
    %cst_12 = arith.constant 1.000000e+00 : f32
    %19 = vector.broadcast %cst_12 : f32 to vector<8x8xf32>
    %20 = arith.addf %18, %19 : vector<8x8xf32>
    %cst_13 = arith.constant 5.000000e-01 : f32
    %21 = vector.broadcast %cst_13 : f32 to vector<8x8xf32>
    %22 = arith.mulf %21, %20 : vector<8x8xf32>
    %c0_14 = arith.constant 0 : index
    %c0_15 = arith.constant 0 : index
    %23 = vector.load %arg4[%c0_14, %c0_15] : memref<8x8xf32, #tpu.memory_space<vmem>>, vector<8x8xf32>
    tpu.vector_store %arg4[%c0_14, %c0_15], %22 {strides = array<i32>} : memref<8x8xf32, #tpu.memory_space<vmem>>, vector<8x8xf32>,
    return
  }
  func.func @transform_0(%arg0: i32) -> (i32, i32) {
    %c0_i32 = arith.constant 0 : i32
    %c0_i32_0 = arith.constant 0 : i32
    return %arg0, %c0_i32 : i32, i32
  }
  func.func @transform_1(%arg0: i32) -> (i32, i32) {
    %c0_i32 = arith.constant 0 : i32
    %c0_i32_0 = arith.constant 0 : i32
    %c0_i32_1 = arith.constant 0 : i32
    return %c0_i32, %c0_i32_0 : i32, i32
  }
  func.func @transform_2(%arg0: i32) -> (i32, i32) {
    %c0_i32 = arith.constant 0 : i32
    %c0_i32_0 = arith.constant 0 : i32
    %c0_i32_1 = arith.constant 0 : i32
    return %c0_i32, %c0_i32_0 : i32, i32
  }
  func.func @transform_3(%arg0: i32) -> (i32, i32) {
    %c0_i32 = arith.constant 0 : i32
    %c0_i32_0 = arith.constant 0 : i32
    return %arg0, %c0_i32 : i32, i32
  }
}

</mosaic_0001>

<llo_original>
// kernel: tpu_custom_call.1
$region0: #{tpu_custom_call.1}
  #allocation0 [shape = 'u32[]', space=smem, size = 0x4, offset = 0x4, fixed_abs, tag = 'smem constant byte address 0x4 - core index']
  #allocation1 [shape = 'u32[144,128]{1,0:T(1,128)}', space=vmem, size = 0x12000, scoped, tag = 'internal scratch']
  %s0 = inlined_call_operand.vmem [shape: f32[8,16], index: 0, kind: input, shape index: {}]
  %s1 = inlined_call_operand.vmem [shape: f32[16,32], index: 1, kind: input, shape index: {}]
  %s2 = inlined_call_operand.vmem [shape: f32[32,8], index: 2, kind: input, shape index: {}]
  %s3 = inlined_call_operand.hbm [shape: f32[8,8], index: 3, kind: output, shape index: {}]
  %s4 = sld [smem:[#allocation0]]
  $region22: #{tpu_custom_call.1} parent=0
    _
  %s6 = ssub.s32 1, %s4
  %s7 = scalar_select 0, %s6, %s4
  $region1: #{tpu_custom_call.1} parent=0
    #allocation2 [shape = 'u8[4096]{0}', space=vmem, size = 0x1000, scoped, tag = 'output window, operand 0, single buffered']
    #allocation3 [shape = 's32[1]{0}', space=sflag, size = 0x4, scoped, tag = 'scoped memory for tpu_custom_call.1']
    %8 = vsyncpa [#allocation3], 0
    // Predicated region
    $region2: #{tpu_custom_call.1} parent=1 // pred_check
      _
    $region3: #{tpu_custom_call.1} parent=1 // pred_check_branch
      %10 = sbr.rel (0) target = $region5
    $region4: #{tpu_custom_call.1} parent=1 // pred_region
      _
    $region5: #{tpu_custom_call.1} parent=1 // pred_fallthru
      _
    // Predicated region
    $region6: #{tpu_custom_call.1} parent=1 // pred_check
      _
    $region7: #{tpu_custom_call.1} parent=1 // pred_check_branch
      %12 = sbr.rel (0) target = $region9
    $region8: #{tpu_custom_call.1} parent=1 // pred_region
      _
    $region9: #{tpu_custom_call.1} parent=1 // pred_fallthru
      _
    // Predicated region
    $region10: #{tpu_custom_call.1} parent=1 // pred_check
      _
    $region11: #{tpu_custom_call.1} parent=1 // pred_check_branch
      %14 = sbr.rel (0) target = $region13
    $region12: #{tpu_custom_call.1} parent=1 // pred_region
      _
    $region13: #{tpu_custom_call.1} parent=1 // pred_fallthru
      _
    %v15 = vld [vmem:[%s0] sm:$0xff]
    %v16 = vld [vmem:[%s1] sm:$0xff]
    %v17 = vld [vmem:[%s1 + $0x8] sm:$0xff]
    %vm18 = vcmask 130048
    %v20 = vsel %vm18, %v15, 0
    %22 = vmatprep.subr.mxu0 0.0
    %23 = vmatpush1.msra.mxu0 0.0
    %24 = vmatprep.subr.mxu0 0.0
    %25 = vmatpush1.msra.mxu0 0.0
    %26 = vmatprep.subr.mxu0 0.0
    %27 = vmatpush1.msra.mxu0 0.0
    %28 = vmatprep.subr.mxu0 0.0
    %29 = vmatpush1.msra.mxu0 0.0
    %30 = vmatprep.subr.mxu0 0.0
    %31 = vmatpush1.msra.mxu0 0.0
    %32 = vmatprep.subr.mxu0 0.0
    %33 = vmatpush1.msra.mxu0 0.0
    %34 = vmatprep.subr.mxu0 0.0
    %35 = vmatpush1.msra.mxu0 0.0
    %36 = vmatprep.subr.mxu0 0.0
    %37 = vmatpush1.msra.mxu0 0.0
    %38 = vmatprep.subr.mxu0 0.0
    %39 = vmatpush1.msra.mxu0 0.0
    %40 = vmatprep.subr.mxu0 0.0
    %41 = vmatpush1.msra.mxu0 0.0
    %42 = vmatprep.subr.mxu0 0.0
    %43 = vmatpush1.msra.mxu0 0.0
    %44 = vmatprep.subr.mxu0 0.0
    %45 = vmatpush1.msra.mxu0 0.0
    %46 = vmatprep.subr.mxu0 0.0
    %47 = vmatpush1.msra.mxu0 0.0
    %48 = vmatprep.subr.mxu0 0.0
    %49 = vmatpush1.msra.mxu0 0.0
    %50 = vmatprep.subr.mxu0 0.0
    %51 = vmatpush1.msra.mxu0 %v17
    %52 = vmatprep.subr.mxu0 0.0
    %53 = vmatpush1.msra.mxu0 %v16
    %54 = vmatprep.subr.mxu0 0.0
    %55 = vmatpush2.msra.mxu0 0.0
    %56 = vmatprep.subr.mxu0 0.0
    %57 = vmatpush2.msra.mxu0 0.0
    %58 = vmatprep.subr.mxu0 0.0
    %59 = vmatpush2.msra.mxu0 0.0
    %60 = vmatprep.subr.mxu0 0.0
    %61 = vmatpush2.msra.mxu0 0.0
    %62 = vmatprep.subr.mxu0 0.0
    %63 = vmatpush2.msra.mxu0 0.0
    %64 = vmatprep.subr.mxu0 0.0
    %65 = vmatpush2.msra.mxu0 0.0
    %66 = vmatprep.subr.mxu0 0.0
    %67 = vmatpush2.msra.mxu0 0.0
    %68 = vmatprep.subr.mxu0 0.0
    %69 = vmatpush2.msra.mxu0 0.0
    %70 = vmatprep.subr.mxu0 0.0
    %71 = vmatpush2.msra.mxu0 0.0
    %72 = vmatprep.subr.mxu0 0.0
    %73 = vmatpush2.msra.mxu0 0.0
    %74 = vmatprep.subr.mxu0 0.0
    %75 = vmatpush2.msra.mxu0 0.0
    %76 = vmatprep.subr.mxu0 0.0
    %77 = vmatpush2.msra.mxu0 0.0
    %78 = vmatprep.subr.mxu0 0.0
    %79 = vmatpush2.msra.mxu0 0.0
    %80 = vmatprep.subr.mxu0 0.0
    %81 = vmatpush2.msra.mxu0 0.0
    %82 = vmatprep.subr.mxu0 0.0
    %83 = vmatpush2.msra.mxu0 0.0
    %84 = vmatprep.subr.mxu0 0.0
    %85 = vmatpush2.msra.mxu0 0.0
    %86 = vmatprep.mubr.f32.mxu0 0.0
    %87 = vmatmul.mubr.f32.gmra.mxu0 %v20
    %v88 = vpop.f32.mrf.mxu0
    %v89 = vadd.f32 0.0, %v88
    %v90 = vpop.f32.mrf.mxu0
    %91 = vdwg.mxu0
    %v92 = vmul.f32 %v89, 0.5
    %v93 = vmul.f32 %v92, 0.5
    %v94 = vtanh.pop %v93
    %v95 = vadd.f32 %v94, 1.0
    %v96 = vmul.f32 %v95, 0.5
    %v97 = vld [vmem:[%s2] sm:$0xff]
    %v98 = vld [vmem:[%s2 + $0x8] sm:$0xff]
    %v99 = vld [vmem:[%s2 + $0x10] sm:$0xff]
    %v100 = vld [vmem:[%s2 + $0x18] sm:$0xff]
    %vm101 = vcmask 261120
    %v103 = vsel %vm101, %v96, 0
    %105 = vmatprep.subr.mxu0 0.0
    %106 = vmatpush1.msra.mxu0 0.0
    %107 = vmatprep.subr.mxu0 0.0
    %108 = vmatpush1.msra.mxu0 0.0
    %109 = vmatprep.subr.mxu0 0.0
    %110 = vmatpush1.msra.mxu0 0.0
    %111 = vmatprep.subr.mxu0 0.0
    %112 = vmatpush1.msra.mxu0 0.0
    %113 = vmatprep.subr.mxu0 0.0
    %114 = vmatpush1.msra.mxu0 0.0
    %115 = vmatprep.subr.mxu0 0.0
    %116 = vmatpush1.msra.mxu0 0.0
    %117 = vmatprep.subr.mxu0 0.0
    %118 = vmatpush1.msra.mxu0 0.0
    %119 = vmatprep.subr.mxu0 0.0
    %120 = vmatpush1.msra.mxu0 0.0
    %121 = vmatprep.subr.mxu0 0.0
    %122 = vmatpush1.msra.mxu0 0.0
    %123 = vmatprep.subr.mxu0 0.0
    %124 = vmatpush1.msra.mxu0 0.0
    %125 = vmatprep.subr.mxu0 0.0
    %126 = vmatpush1.msra.mxu0 0.0
    %127 = vmatprep.subr.mxu0 0.0
    %128 = vmatpush1.msra.mxu0 0.0
    %129 = vmatprep.subr.mxu0 0.0
    %130 = vmatpush1.msra.mxu0 %v100
    %131 = vmatprep.subr.mxu0 0.0
    %132 = vmatpush1.msra.mxu0 %v99
    %133 = vmatprep.subr.mxu0 0.0
    %134 = vmatpush1.msra.mxu0 %v98
    %135 = vmatprep.subr.mxu0 0.0
    %136 = vmatpush1.msra.mxu0 %v97
    %137 = vmatprep.subr.mxu0 0.0
    %138 = vmatpush2.msra.mxu0 0.0
    %139 = vmatprep.subr.mxu0 0.0
    %140 = vmatpush2.msra.mxu0 0.0
    %141 = vmatprep.subr.mxu0 0.0
    %142 = vmatpush2.msra.mxu0 0.0
    %143 = vmatprep.subr.mxu0 0.0
    %144 = vmatpush2.msra.mxu0 0.0
    %145 = vmatprep.subr.mxu0 0.0
    %146 = vmatpush2.msra.mxu0 0.0
    %147 = vmatprep.subr.mxu0 0.0
    %148 = vmatpush2.msra.mxu0 0.0
    %149 = vmatprep.subr.mxu0 0.0
    %150 = vmatpush2.msra.mxu0 0.0
    %151 = vmatprep.subr.mxu0 0.0
    %152 = vmatpush2.msra.mxu0 0.0
    %153 = vmatprep.subr.mxu0 0.0
    %154 = vmatpush2.msra.mxu0 0.0
    %155 = vmatprep.subr.mxu0 0.0
    %156 = vmatpush2.msra.mxu0 0.0
    %157 = vmatprep.subr.mxu0 0.0
    %158 = vmatpush2.msra.mxu0 0.0
    %159 = vmatprep.subr.mxu0 0.0
    %160 = vmatpush2.msra.mxu0 0.0
    %161 = vmatprep.subr.mxu0 0.0
    %162 = vmatpush2.msra.mxu0 0.0
    %163 = vmatprep.subr.mxu0 0.0
    %164 = vmatpush2.msra.mxu0 0.0
    %165 = vmatprep.subr.mxu0 0.0
    %166 = vmatpush2.msra.mxu0 0.0
    %167 = vmatprep.subr.mxu0 0.0
    %168 = vmatpush2.msra.mxu0 0.0
    %169 = vmatprep.mubr.f32.mxu0 0.0
    %170 = vmatmul.mubr.f32.gmra.mxu0 %v103
    %v171 = vpop.f32.mrf.mxu0
    %v172 = vadd.f32 0.0, %v171
    %v173 = vpop.f32.mrf.mxu0
    %174 = vdwg.mxu0
    %v175 = vmul.f32 %v172, 0.5
    %v176 = vmul.f32 %v175, 0.5
    %v177 = vtanh.pop %v176
    %v178 = vadd.f32 %v177, 1.0
    %v179 = vmul.f32 %v178, 0.5
    %vm180 = vcmask 64512
    %181 = vst.msk [vmem:[#allocation2] sm:$0xff] %vm180, %v179
    // Predicated region
    $region14: #{tpu_custom_call.1} parent=1 // pred_check
      _
    $region15: #{tpu_custom_call.1} parent=1 // pred_check_branch
      %183 = sbr.rel (0) target = $region17
    $region16: #{tpu_custom_call.1} parent=1 // pred_region
      %s185 = ssub.s32 128, 128
      %186 = vsyncadd [#allocation3], %s185
      %s188 = sshll.u32 [#allocation2], 4
      %s189 = int_to_ptr.vmem [resolvable:$true] %s188
      %191 = dma.vmem_to_hbm [thread:$0]  %s189, 128, %s3, [#allocation3]
    $region17: #{tpu_custom_call.1} parent=1 // pred_fallthru
      _
    // Predicated region
    $region18: #{tpu_custom_call.1} parent=1 // pred_check
      _
    $region19: #{tpu_custom_call.1} parent=1 // pred_check_branch
      %193 = sbr.rel (0) target = $region21
    $region20: #{tpu_custom_call.1} parent=1 // pred_region
      %194 = dma.done [#allocation3], 128
    $region21: #{tpu_custom_call.1} parent=1 // pred_fallthru
      _
    %195 = vsyncpa [#allocation3], 1

// kernel: tpu_custom_call.1
$region0: #{tpu_custom_call.1}
  #allocation0 [shape = 'u32[]', space=smem, size = 0x4, offset = 0x4, fixed_abs, tag = 'smem constant byte address 0x4 - core index']
  #allocation1 [shape = 'u32[144,128]{1,0:T(1,128)}', space=vmem, size = 0x12000, scoped, tag = 'internal scratch']
  %s0 = inlined_call_operand.vmem [shape: f32[8,16], index: 0, kind: input, shape index: {}]
  %s1 = inlined_call_operand.vmem [shape: f32[16,32], index: 1, kind: input, shape index: {}]
  %s2 = inlined_call_operand.vmem [shape: f32[32,8], index: 2, kind: input, shape index: {}]
  %s3 = inlined_call_operand.hbm [shape: f32[8,8], index: 3, kind: output, shape index: {}]
  %s4 = sld [smem:[#allocation0]]
  $region22: #{tpu_custom_call.1} parent=0
    _
  %s6 = ssub.s32 1, %s4
  %s7 = scalar_select 0, %s6, %s4
  $region1: #{tpu_custom_call.1} parent=0
    #allocation2 [shape = 'u8[4096]{0}', space=vmem, size = 0x1000, scoped, tag = 'output window, operand 0, single buffered']
    #allocation3 [shape = 's32[1]{0}', space=sflag, size = 0x4, scoped, tag = 'scoped memory for tpu_custom_call.1']
    %8 = vsyncpa [#allocation3], 0
    // Predicated region
    $region2: #{tpu_custom_call.1} parent=1 // pred_check
      _
    $region3: #{tpu_custom_call.1} parent=1 // pred_check_branch
      %10 = sbr.rel (0) target = $region5
    $region4: #{tpu_custom_call.1} parent=1 // pred_region
      _
    $region5: #{tpu_custom_call.1} parent=1 // pred_fallthru
      _
    // Predicated region
    $region6: #{tpu_custom_call.1} parent=1 // pred_check
      _
    $region7: #{tpu_custom_call.1} parent=1 // pred_check_branch
      %12 = sbr.rel (0) target = $region9
    $region8: #{tpu_custom_call.1} parent=1 // pred_region
      _
    $region9: #{tpu_custom_call.1} parent=1 // pred_fallthru
      _
    // Predicated region
    $region10: #{tpu_custom_call.1} parent=1 // pred_check
      _
    $region11: #{tpu_custom_call.1} parent=1 // pred_check_branch
      %14 = sbr.rel (0) target = $region13
    $region12: #{tpu_custom_call.1} parent=1 // pred_region
      _
    $region13: #{tpu_custom_call.1} parent=1 // pred_fallthru
      _
    %v15 = vld [vmem:[%s0] sm:$0xff]
    %v16 = vld [vmem:[%s1] sm:$0xff]
    %v17 = vld [vmem:[%s1 + $0x8] sm:$0xff]
    %vm18 = vcmask 130048
    %v20 = vsel %vm18, %v15, 0
    %22 = vmatprep.subr.mxu0 0.0
    %23 = vmatpush1.msra.mxu0 0.0
    %24 = vmatprep.subr.mxu0 0.0
    %25 = vmatpush1.msra.mxu0 0.0
    %26 = vmatprep.subr.mxu0 0.0
    %27 = vmatpush1.msra.mxu0 0.0
    %28 = vmatprep.subr.mxu0 0.0
    %29 = vmatpush1.msra.mxu0 0.0
    %30 = vmatprep.subr.mxu0 0.0
    %31 = vmatpush1.msra.mxu0 0.0
    %32 = vmatprep.subr.mxu0 0.0
    %33 = vmatpush1.msra.mxu0 0.0
    %34 = vmatprep.subr.mxu0 0.0
    %35 = vmatpush1.msra.mxu0 0.0
    %36 = vmatprep.subr.mxu0 0.0
    %37 = vmatpush1.msra.mxu0 0.0
    %38 = vmatprep.subr.mxu0 0.0
    %39 = vmatpush1.msra.mxu0 0.0
    %40 = vmatprep.subr.mxu0 0.0
    %41 = vmatpush1.msra.mxu0 0.0
    %42 = vmatprep.subr.mxu0 0.0
    %43 = vmatpush1.msra.mxu0 0.0
    %44 = vmatprep.subr.mxu0 0.0
    %45 = vmatpush1.msra.mxu0 0.0
    %46 = vmatprep.subr.mxu0 0.0
    %47 = vmatpush1.msra.mxu0 0.0
    %48 = vmatprep.subr.mxu0 0.0
    %49 = vmatpush1.msra.mxu0 0.0
    %50 = vmatprep.subr.mxu0 0.0
    %51 = vmatpush1.msra.mxu0 %v17
    %52 = vmatprep.subr.mxu0 0.0
    %53 = vmatpush1.msra.mxu0 %v16
    %54 = vmatprep.subr.mxu0 0.0
    %55 = vmatpush2.msra.mxu0 0.0
    %56 = vmatprep.subr.mxu0 0.0
    %57 = vmatpush2.msra.mxu0 0.0
    %58 = vmatprep.subr.mxu0 0.0
    %59 = vmatpush2.msra.mxu0 0.0
    %60 = vmatprep.subr.mxu0 0.0
    %61 = vmatpush2.msra.mxu0 0.0
    %62 = vmatprep.subr.mxu0 0.0
    %63 = vmatpush2.msra.mxu0 0.0
    %64 = vmatprep.subr.mxu0 0.0
    %65 = vmatpush2.msra.mxu0 0.0
    %66 = vmatprep.subr.mxu0 0.0
    %67 = vmatpush2.msra.mxu0 0.0
    %68 = vmatprep.subr.mxu0 0.0
    %69 = vmatpush2.msra.mxu0 0.0
    %70 = vmatprep.subr.mxu0 0.0
    %71 = vmatpush2.msra.mxu0 0.0
    %72 = vmatprep.subr.mxu0 0.0
    %73 = vmatpush2.msra.mxu0 0.0
    %74 = vmatprep.subr.mxu0 0.0
    %75 = vmatpush2.msra.mxu0 0.0
    %76 = vmatprep.subr.mxu0 0.0
    %77 = vmatpush2.msra.mxu0 0.0
    %78 = vmatprep.subr.mxu0 0.0
    %79 = vmatpush2.msra.mxu0 0.0
    %80 = vmatprep.subr.mxu0 0.0
    %81 = vmatpush2.msra.mxu0 0.0
    %82 = vmatprep.subr.mxu0 0.0
    %83 = vmatpush2.msra.mxu0 0.0
    %84 = vmatprep.subr.mxu0 0.0
    %85 = vmatpush2.msra.mxu0 0.0
    %86 = vmatprep.mubr.f32.mxu0 0.0
    %87 = vmatmul.mubr.f32.gmra.mxu0 %v20
    %v88 = vpop.f32.mrf.mxu0
    %v89 = vadd.f32 0.0, %v88
    %v90 = vpop.f32.mrf.mxu0
    %91 = vdwg.mxu0
    %v92 = vmul.f32 %v89, 0.5
    %v93 = vmul.f32 %v92, 0.5
    %v94 = vtanh.pop %v93
    %v95 = vadd.f32 %v94, 1.0
    %v96 = vmul.f32 %v95, 0.5
    %v97 = vld [vmem:[%s2] sm:$0xff]
    %v98 = vld [vmem:[%s2 + $0x8] sm:$0xff]
    %v99 = vld [vmem:[%s2 + $0x10] sm:$0xff]
    %v100 = vld [vmem:[%s2 + $0x18] sm:$0xff]
    %vm101 = vcmask 261120
    %v103 = vsel %vm101, %v96, 0
    %105 = vmatprep.subr.mxu0 0.0
    %106 = vmatpush1.msra.mxu0 0.0
    %107 = vmatprep.subr.mxu0 0.0
    %108 = vmatpush1.msra.mxu0 0.0
    %109 = vmatprep.subr.mxu0 0.0
    %110 = vmatpush1.msra.mxu0 0.0
    %111 = vmatprep.subr.mxu0 0.0
    %112 = vmatpush1.msra.mxu0 0.0
    %113 = vmatprep.subr.mxu0 0.0
    %114 = vmatpush1.msra.mxu0 0.0
    %115 = vmatprep.subr.mxu0 0.0
    %116 = vmatpush1.msra.mxu0 0.0
    %117 = vmatprep.subr.mxu0 0.0
    %118 = vmatpush1.msra.mxu0 0.0
    %119 = vmatprep.subr.mxu0 0.0
    %120 = vmatpush1.msra.mxu0 0.0
    %121 = vmatprep.subr.mxu0 0.0
    %122 = vmatpush1.msra.mxu0 0.0
    %123 = vmatprep.subr.mxu0 0.0
    %124 = vmatpush1.msra.mxu0 0.0
    %125 = vmatprep.subr.mxu0 0.0
    %126 = vmatpush1.msra.mxu0 0.0
    %127 = vmatprep.subr.mxu0 0.0
    %128 = vmatpush1.msra.mxu0 0.0
    %129 = vmatprep.subr.mxu0 0.0
    %130 = vmatpush1.msra.mxu0 %v100
    %131 = vmatprep.subr.mxu0 0.0
    %132 = vmatpush1.msra.mxu0 %v99
    %133 = vmatprep.subr.mxu0 0.0
    %134 = vmatpush1.msra.mxu0 %v98
    %135 = vmatprep.subr.mxu0 0.0
    %136 = vmatpush1.msra.mxu0 %v97
    %137 = vmatprep.subr.mxu0 0.0
    %138 = vmatpush2.msra.mxu0 0.0
    %139 = vmatprep.subr.mxu0 0.0
    %140 = vmatpush2.msra.mxu0 0.0
    %141 = vmatprep.subr.mxu0 0.0
    %142 = vmatpush2.msra.mxu0 0.0
    %143 = vmatprep.subr.mxu0 0.0
    %144 = vmatpush2.msra.mxu0 0.0
    %145 = vmatprep.subr.mxu0 0.0
    %146 = vmatpush2.msra.mxu0 0.0
    %147 = vmatprep.subr.mxu0 0.0
    %148 = vmatpush2.msra.mxu0 0.0
    %149 = vmatprep.subr.mxu0 0.0
    %150 = vmatpush2.msra.mxu0 0.0
    %151 = vmatprep.subr.mxu0 0.0
    %152 = vmatpush2.msra.mxu0 0.0
    %153 = vmatprep.subr.mxu0 0.0
    %154 = vmatpush2.msra.mxu0 0.0
    %155 = vmatprep.subr.mxu0 0.0
    %156 = vmatpush2.msra.mxu0 0.0
    %157 = vmatprep.subr.mxu0 0.0
    %158 = vmatpush2.msra.mxu0 0.0
    %159 = vmatprep.subr.mxu0 0.0
    %160 = vmatpush2.msra.mxu0 0.0
    %161 = vmatprep.subr.mxu0 0.0
    %162 = vmatpush2.msra.mxu0 0.0
    %163 = vmatprep.subr.mxu0 0.0
    %164 = vmatpush2.msra.mxu0 0.0
    %165 = vmatprep.subr.mxu0 0.0
    %166 = vmatpush2.msra.mxu0 0.0
    %167 = vmatprep.subr.mxu0 0.0
    %168 = vmatpush2.msra.mxu0 0.0
    %169 = vmatprep.mubr.f32.mxu0 0.0
    %170 = vmatmul.mubr.f32.gmra.mxu0 %v103
    %v171 = vpop.f32.mrf.mxu0
    %v172 = vadd.f32 0.0, %v171
    %v173 = vpop.f32.mrf.mxu0
    %174 = vdwg.mxu0
    %v175 = vmul.f32 %v172, 0.5
    %v176 = vmul.f32 %v175, 0.5
    %v177 = vtanh.pop %v176
    %v178 = vadd.f32 %v177, 1.0
    %v179 = vmul.f32 %v178, 0.5
    %vm180 = vcmask 64512
    %181 = vst.msk [vmem:[#allocation2] sm:$0xff] %vm180, %v179
    // Predicated region
    $region14: #{tpu_custom_call.1} parent=1 // pred_check
      _
    $region15: #{tpu_custom_call.1} parent=1 // pred_check_branch
      %183 = sbr.rel (0) target = $region17
    $region16: #{tpu_custom_call.1} parent=1 // pred_region
      %s185 = ssub.s32 128, 128
      %186 = vsyncadd [#allocation3], %s185
      %s188 = sshll.u32 [#allocation2], 4
      %s189 = int_to_ptr.vmem [resolvable:$true] %s188
      %191 = dma.vmem_to_hbm [thread:$0]  %s189, 128, %s3, [#allocation3]
    $region17: #{tpu_custom_call.1} parent=1 // pred_fallthru
      _
    // Predicated region
    $region18: #{tpu_custom_call.1} parent=1 // pred_check
      _
    $region19: #{tpu_custom_call.1} parent=1 // pred_check_branch
      %193 = sbr.rel (0) target = $region21
    $region20: #{tpu_custom_call.1} parent=1 // pred_region
      %194 = dma.done [#allocation3], 128
    $region21: #{tpu_custom_call.1} parent=1 // pred_fallthru
      _
    %195 = vsyncpa [#allocation3], 1

</llo_original>
